<compile_context>
chip_gen: v5e
topology: v5e:2x2
jax: 0.10.0
libtpu: 0.0.40
codegen_flags: <defaults>
</compile_context>

<pallas_src>
import functools

import jax
import jax.numpy as jnp
from jax.experimental import pallas as pl
from jax.experimental.pallas import tpu as pltpu

DROPOUT_P = 0.2


def _round_up(x, m):
    return (x + m - 1) // m * m


def _ffn_kernel(x_ref, w1_ref, b1_ref, w2_ref, b2_ref, *rest, p, use_dropout):
    # x_ref: (tm, Cp) f32   w1_ref: (Cp, Hp) bf16   b1_ref: (1, Hp) f32
    # w2_ref: (Hp, Cp) bf16 b2_ref: (1, Cp) f32     [bits_ref: (tm, Cp) u32]
    if use_dropout:
        bits_ref, o_ref = rest
    else:
        (o_ref,) = rest

    x = x_ref[...].astype(jnp.bfloat16)                 # bf16 MXU inputs
    h = jnp.dot(x, w1_ref[...], preferred_element_type=jnp.float32)
    h = jnp.maximum(h + b1_ref[...], 0.0)               # bias + ReLU in f32

    o = jnp.dot(h.astype(jnp.bfloat16), w2_ref[...],
                preferred_element_type=jnp.float32) + b2_ref[...]

    if use_dropout:
        # Inverted dropout: keep iff bits >= p * 2^32 (unsigned integer compare,
        # no shift / int->float convert / float multiply on the VPU).
        threshold = jnp.uint32(int(round(p * (2.0 ** 32))))
        keep = bits_ref[...] >= threshold
        o = jnp.where(keep, o * jnp.float32(1.0 / (1.0 - p)), 0.0)
        # TODO(synk): mask bit-pattern does not match torch's RNG stream; only
        # the Bernoulli(1-p) + 1/(1-p) scaling semantics of nn.Dropout.

    o_ref[...] = o.astype(o_ref.dtype)


def feed_forward(x, w1, b1, w2, b2, *, train=True, rng=None, p=DROPOUT_P):
    """x: (B, T, C) float32, w1: (C, 4C), b1: (1, 4C), w2: (4C, C), b2: (1, C)."""
    B, T, C = x.shape
    H = w1.shape[1]
    M = B * T

    # Lane-dense (multiple-of-128) feature dims; MXU/pipeline friendly row tiles.
    C_pad = _round_up(C, 128)
    H_pad = _round_up(H, 128)
    tm = min(256, _round_up(M, 8))          # 256-row tiles (also a 128-multiple for v5e)
    M_pad = _round_up(M, tm)

    x2d = jnp.pad(x.reshape(M, C), ((0, M_pad - M), (0, C_pad - C)))
    w1_p = jnp.pad(w1, ((0, C_pad - C), (0, H_pad - H))).astype(jnp.bfloat16)
    b1_p = jnp.pad(b1, ((0, 0), (0, H_pad - H))).astype(jnp.float32)
    w2_p = jnp.pad(w2, ((0, H_pad - H), (0, C_pad - C))).astype(jnp.bfloat16)
    b2_p = jnp.pad(b2, ((0, 0), (0, C_pad - C))).astype(jnp.float32)

    use_dropout = bool(train) and p > 0.0

    inputs = [x2d, w1_p, b1_p, w2_p, b2_p]
    in_specs = [
        pl.BlockSpec((tm, C_pad), lambda i: (i, 0)),       # x row tile (pipelined)
        pl.BlockSpec((C_pad, H_pad), lambda i: (0, 0)),    # W1 (resident, bf16)
        pl.BlockSpec((1, H_pad), lambda i: (0, 0)),        # b1
        pl.BlockSpec((H_pad, C_pad), lambda i: (0, 0)),    # W2 (resident, bf16)
        pl.BlockSpec((1, C_pad), lambda i: (0, 0)),        # b2
    ]
    if use_dropout:
        if rng is None:
            rng = jax.random.PRNGKey(0)
        bits = jax.random.bits(rng, (M_pad, C_pad), dtype=jnp.uint32)
        inputs.append(bits)
        in_specs.append(pl.BlockSpec((tm, C_pad), lambda i: (i, 0)))

    out_bytes = M_pad * C_pad * x2d.dtype.itemsize
    bytes_accessed = out_bytes + sum(int(a.size) * a.dtype.itemsize for a in inputs)
    cost = pl.CostEstimate(
        flops=4 * M_pad * C_pad * H_pad,   # two matmuls, 2*M*K*N flops each
        transcendentals=0,
        bytes_accessed=int(bytes_accessed),
    )

    kernel = functools.partial(_ffn_kernel, p=p, use_dropout=use_dropout)

    # TODO(synk): for very large C (>= 2048) add an H-tiled inner accumulation
    # loop so W1/W2 need not be fully VMEM-resident (matters on v7x's 64 MiB).
    out2d = pl.pallas_call(
        kernel,
        out_shape=jax.ShapeDtypeStruct((M_pad, C_pad), x.dtype),
        grid=(M_pad // tm,),
        in_specs=in_specs,
        out_specs=pl.BlockSpec((tm, C_pad), lambda i: (i, 0)),
        compiler_params=pltpu.CompilerParams(
            dimension_semantics=("parallel",),   # row tiles are independent
            vmem_limit_bytes=64 * 1024 * 1024,   # above 16/32 MiB defaults, fits all gens
        ),
        cost_estimate=cost,
    )(*inputs)

    return out2d[:M, :C].reshape(B, T, C)


def reference_ffn(x, w1, b1, w2, b2):
    # Eval-mode (no dropout) reference, matching the kernel's bf16-input /
    # f32-accumulate matmul precision.
    B, T, C = x.shape
    x2d = x.reshape(-1, C).astype(jnp.bfloat16)
    h = jnp.dot(x2d, w1.astype(jnp.bfloat16),
                preferred_element_type=jnp.float32) + b1[0]
    h = jnp.maximum(h, 0.0)
    o = jnp.dot(h.astype(jnp.bfloat16), w2.astype(jnp.bfloat16),
                preferred_element_type=jnp.float32) + b2[0]
    return o.reshape(B, T, C)


if __name__ == "__main__":
    # Small shapes consistent with the module: n_embd scaled down 384 -> 32.
    B, T, C = 2, 8, 32
    H = 4 * C

    key = jax.random.PRNGKey(0)
    kx, k1, k2, k3, k4, kd = jax.random.split(key, 6)

    x = jax.random.normal(kx, (B, T, C), dtype=jnp.float32)
    # nn.Linear-style init (uniform +/- 1/sqrt(fan_in)), deterministic.
    w1 = jax.random.uniform(k1, (C, H), jnp.float32, -1.0, 1.0) / jnp.sqrt(C)
    b1 = jax.random.uniform(k2, (1, H), jnp.float32, -1.0, 1.0) / jnp.sqrt(C)
    w2 = jax.random.uniform(k3, (H, C), jnp.float32, -1.0, 1.0) / jnp.sqrt(H)
    b2 = jax.random.uniform(k4, (1, C), jnp.float32, -1.0, 1.0) / jnp.sqrt(H)

    # Training-mode forward (dropout active, deterministic given the rng key).
    y_train = jax.block_until_ready(
        feed_forward(x, w1, b1, w2, b2, train=True, rng=kd))
    assert y_train.shape == (B, T, C)
    zero_frac = float(jnp.mean(y_train == 0.0))
    assert 0.05 < zero_frac < 0.4, zero_frac      # ~= dropout rate of 0.2

    # Eval-mode forward, checked against a pure-JAX reference.
    y_eval = jax.block_until_ready(feed_forward(x, w1, b1, w2, b2, train=False))
    y_ref = reference_ffn(x, w1, b1, w2, b2)
    assert y_eval.shape == (B, T, C)
    assert jnp.allclose(y_eval, y_ref, atol=1e-2, rtol=1e-2), \
        float(jnp.max(jnp.abs(y_eval - y_ref)))

    print("KERNEL_OK")
</pallas_src>

<mosaic_0001>
module attributes {stable_mosaic.version = 11 : i64} {
  func.func @_ffn_kernel(%arg0: i32, %arg1: memref<16x128xf32, #tpu.memory_space<vmem>>, %arg2: memref<128x128xbf16, #tpu.memory_space<vmem>>, %arg3: memref<1x128xf32, #tpu.memory_space<vmem>>, %arg4: memref<128x128xbf16, #tpu.memory_space<vmem>>, %arg5: memref<1x128xf32, #tpu.memory_space<vmem>>, %arg6: memref<16x128xi32, #tpu.memory_space<vmem>>, %arg7: memref<16x128xf32, #tpu.memory_space<vmem>>) attributes {dimension_semantics = [#tpu.dimension_semantics<parallel>], iteration_bounds = array<i64: 1>, scalar_prefetch = 0 : i64, scratch_operands = 0 : i64, tpu.core_type = #tpu.core_type<tc>, window_params = [{transform_indices = @transform_0, window_bounds = array<i64: 16, 128>}, {pipeline_mode = #tpu.pipeline_mode<synchronous>, transform_indices = @transform_1, window_bounds = array<i64: 128, 128>}, {pipeline_mode = #tpu.pipeline_mode<synchronous>, transform_indices = @transform_2, window_bounds = array<i64: 1, 128>}, {pipeline_mode = #tpu.pipeline_mode<synchronous>, transform_indices = @transform_3, window_bounds = array<i64: 128, 128>}, {pipeline_mode = #tpu.pipeline_mode<synchronous>, transform_indices = @transform_4, window_bounds = array<i64: 1, 128>}, {transform_indices = @transform_5, window_bounds = array<i64: 16, 128>}, {transform_indices = @transform_6, window_bounds = array<i64: 16, 128>}]} {
    %c0 = arith.constant 0 : index
    %c0_0 = arith.constant 0 : index
    %0 = vector.load %arg1[%c0, %c0_0] : memref<16x128xf32, #tpu.memory_space<vmem>>, vector<16x128xf32>
    %1 = arith.truncf %0 : vector<16x128xf32> to vector<16x128xbf16>
    %c0_1 = arith.constant 0 : index
    %c0_2 = arith.constant 0 : index
    %2 = vector.load %arg2[%c0_1, %c0_2] : memref<128x128xbf16, #tpu.memory_space<vmem>>, vector<128x128xbf16>
    %cst = arith.constant dense<0.000000e+00> : vector<16x128xf32>
    %3 = tpu.matmul %1, %2, %cst {dimension_numbers = #tpu.dot_dimension_numbers<[1], [0], [0], [1], [0, 0, 1, 1], [], []>} : vector<16x128xbf16>, vector<128x128xbf16>, vector<16x128xf32> -> vector<16x128xf32>
    %c0_3 = arith.constant 0 : index
    %c0_4 = arith.constant 0 : index
    %4 = vector.load %arg3[%c0_3, %c0_4] : memref<1x128xf32, #tpu.memory_space<vmem>>, vector<1x128xf32>
    %5 = vector.broadcast %4 : vector<1x128xf32> to vector<16x128xf32>
    %6 = arith.addf %3, %5 : vector<16x128xf32>
    %cst_5 = arith.constant 0.000000e+00 : f32
    %7 = vector.broadcast %cst_5 : f32 to vector<16x128xf32>
    %8 = arith.maximumf %6, %7 : vector<16x128xf32>
    %9 = arith.truncf %8 : vector<16x128xf32> to vector<16x128xbf16>
    %c0_6 = arith.constant 0 : index
    %c0_7 = arith.constant 0 : index
    %10 = vector.load %arg4[%c0_6, %c0_7] : memref<128x128xbf16, #tpu.memory_space<vmem>>, vector<128x128xbf16>
    %cst_8 = arith.constant dense<0.000000e+00> : vector<16x128xf32>
    %11 = tpu.matmul %9, %10, %cst_8 {dimension_numbers = #tpu.dot_dimension_numbers<[1], [0], [0], [1], [0, 0, 1, 1], [], []>} : vector<16x128xbf16>, vector<128x128xbf16>, vector<16x128xf32> -> vector<16x128xf32>
    %c0_9 = arith.constant 0 : index
    %c0_10 = arith.constant 0 : index
    %12 = vector.load %arg5[%c0_9, %c0_10] : memref<1x128xf32, #tpu.memory_space<vmem>>, vector<1x128xf32>
    %13 = vector.broadcast %12 : vector<1x128xf32> to vector<16x128xf32>
    %14 = arith.addf %11, %13 : vector<16x128xf32>
    %c0_11 = arith.constant 0 : index
    %c0_12 = arith.constant 0 : index
    %15 = vector.load %arg6[%c0_11, %c0_12] : memref<16x128xi32, #tpu.memory_space<vmem>>, vector<16x128xi32>
    %c858993459_i32 = arith.constant 858993459 : i32
    %16 = vector.broadcast %c858993459_i32 : i32 to vector<16x128xi32>
    %17 = arith.cmpi uge, %15, %16 : vector<16x128xi32>
    %cst_13 = arith.constant 1.250000e+00 : f32
    %18 = vector.broadcast %cst_13 : f32 to vector<16x128xf32>
    %19 = arith.mulf %14, %18 : vector<16x128xf32>
    %cst_14 = arith.constant 0.000000e+00 : f32
    %20 = vector.broadcast %cst_14 : f32 to vector<16x128xf32>
    %21 = arith.select %17, %19, %20 : vector<16x128xi1>, vector<16x128xf32>
    %c0_15 = arith.constant 0 : index
    %c0_16 = arith.constant 0 : index
    %22 = vector.load %arg7[%c0_15, %c0_16] : memref<16x128xf32, #tpu.memory_space<vmem>>, vector<16x128xf32>
    tpu.vector_store %arg7[%c0_15, %c0_16], %21 {strides = array<i32>} : memref<16x128xf32, #tpu.memory_space<vmem>>, vector<16x128xf32>,
    return
  }
  func.func @transform_0(%arg0: i32) -> (i32, i32) {
    %c0_i32 = arith.constant 0 : i32
    %c0_i32_0 = arith.constant 0 : i32
    return %arg0, %c0_i32 : i32, i32
  }
  func.func @transform_1(%arg0: i32) -> (i32, i32) {
    %c0_i32 = arith.constant 0 : i32
    %c0_i32_0 = arith.constant 0 : i32
    %c0_i32_1 = arith.constant 0 : i32
    return %c0_i32, %c0_i32_0 : i32, i32
  }
  func.func @transform_2(%arg0: i32) -> (i32, i32) {
    %c0_i32 = arith.constant 0 : i32
    %c0_i32_0 = arith.constant 0 : i32
    %c0_i32_1 = arith.constant 0 : i32
    return %c0_i32, %c0_i32_0 : i32, i32
  }
  func.func @transform_3(%arg0: i32) -> (i32, i32) {
    %c0_i32 = arith.constant 0 : i32
    %c0_i32_0 = arith.constant 0 : i32
    %c0_i32_1 = arith.constant 0 : i32
    return %c0_i32, %c0_i32_0 : i32, i32
  }
  func.func @transform_4(%arg0: i32) -> (i32, i32) {
    %c0_i32 = arith.constant 0 : i32
    %c0_i32_0 = arith.constant 0 : i32
    %c0_i32_1 = arith.constant 0 : i32
    return %c0_i32, %c0_i32_0 : i32, i32
  }
  func.func @transform_5(%arg0: i32) -> (i32, i32) {
    %c0_i32 = arith.constant 0 : i32
    %c0_i32_0 = arith.constant 0 : i32
    return %arg0, %c0_i32 : i32, i32
  }
  func.func @transform_6(%arg0: i32) -> (i32, i32) {
    %c0_i32 = arith.constant 0 : i32
    %c0_i32_0 = arith.constant 0 : i32
    return %arg0, %c0_i32 : i32, i32
  }
}

</mosaic_0001>

<llo_original>
// kernel: tpu_custom_call.1
$region0: #{tpu_custom_call.1}
  #allocation0 [shape = 'u32[]', space=smem, size = 0x4, offset = 0x4, fixed_abs, tag = 'smem constant byte address 0x4 - core index']
  #allocation1 [shape = 'u32[72,128]{1,0:T(1,128)}', space=vmem, size = 0x9000, scoped, tag = 'internal scratch']
  %s0 = inlined_call_operand.hbm [shape: f32[16,128], index: 0, kind: input, shape index: {}]
  %s1 = inlined_call_operand.hbm [shape: bf16[128,128], index: 1, kind: input, shape index: {}]
  %s2 = inlined_call_operand.vmem [shape: f32[1,128], index: 2, kind: input, shape index: {}]
  %s3 = inlined_call_operand.hbm [shape: bf16[128,128], index: 3, kind: input, shape index: {}]
  %s4 = inlined_call_operand.vmem [shape: f32[1,128], index: 4, kind: input, shape index: {}]
  %s5 = inlined_call_operand.hbm [shape: u32[16,128], index: 5, kind: input, shape index: {}]
  %s6 = inlined_call_operand.hbm [shape: f32[16,128], index: 6, kind: output, shape index: {}]
  %s7 = sld [smem:[#allocation0]]
  $region50: #{tpu_custom_call.1} parent=0
    _
  %s9 = ssub.s32 1, %s7
  %s10 = scalar_select 0, %s9, %s7
  $region1: #{tpu_custom_call.1} parent=0
    #allocation2 [shape = 'u8[8192]{0}', space=vmem, size = 0x2000, scoped, tag = 'input window, operand 0, single buffered']
    #allocation3 [shape = 's32[1]{0}', space=sflag, size = 0x4, scoped, tag = 'scoped memory for tpu_custom_call.1']
    #allocation4 [shape = 's32[1]{0}', space=sflag, size = 0x4, scoped, tag = 'scoped memory for tpu_custom_call.1']
    #allocation5 [shape = 'u8[32768]{0}', space=vmem, size = 0x8000, scoped, tag = 'input window, operand 1, single buffered']
    #allocation6 [shape = 's32[1]{0}', space=sflag, size = 0x4, scoped, tag = 'scoped memory for tpu_custom_call.1']
    #allocation7 [shape = 'u8[32768]{0}', space=vmem, size = 0x8000, scoped, tag = 'input window, operand 3, single buffered']
    #allocation8 [shape = 'u8[8192]{0}', space=vmem, size = 0x2000, scoped, tag = 'input window, operand 5, single buffered']
    #allocation9 [shape = 's32[1]{0}', space=sflag, size = 0x4, scoped, tag = 'scoped memory for tpu_custom_call.1']
    #allocation10 [shape = 'u8[8192]{0}', space=vmem, size = 0x2000, scoped, tag = 'output window, operand 0, single buffered']
    %11 = vsyncpa [#allocation3], 0
    %12 = vsyncpa [#allocation6], 0
    %13 = vsyncpa [#allocation9], 0
    %14 = vsyncpa [#allocation4], 0
    // Predicated region
    $region2: #{tpu_custom_call.1} parent=1 // pred_check
      _
    $region3: #{tpu_custom_call.1} parent=1 // pred_check_branch
      %16 = sbr.rel (0) target = $region5
    $region4: #{tpu_custom_call.1} parent=1 // pred_region
      %18 = vsyncadd [#allocation3], 0
      %s19 = sshll.u32 %s0, 4
      %s20 = int_to_ptr.hbm [resolvable:$true] %s19
      %s21 = sshll.u32 [#allocation2], 4
      %s22 = int_to_ptr.vmem [resolvable:$true] %s21
      %27 = dma.hbm_to_vmem [thread:$0]  %s20, 256, %s22, [#allocation3], 128, 128, 8
    $region5: #{tpu_custom_call.1} parent=1 // pred_fallthru
      _
    // Predicated region
    $region6: #{tpu_custom_call.1} parent=1 // pred_check
      _
    $region7: #{tpu_custom_call.1} parent=1 // pred_check_branch
      %29 = sbr.rel (0) target = $region9
    $region8: #{tpu_custom_call.1} parent=1 // pred_region
      %31 = vsyncadd [#allocation6], 0
      %s32 = sshll.u32 %s1, 4
      %s33 = int_to_ptr.hbm [resolvable:$true] %s32
      %s34 = sshll.u32 [#allocation5], 4
      %s35 = int_to_ptr.vmem [resolvable:$true] %s34
      %40 = dma.hbm_to_vmem [thread:$0]  %s33, 1024, %s35, [#allocation6], 64, 64, 4
    $region9: #{tpu_custom_call.1} parent=1 // pred_fallthru
      _
    // Predicated region
    $region10: #{tpu_custom_call.1} parent=1 // pred_check
      _
    $region11: #{tpu_custom_call.1} parent=1 // pred_check_branch
      %42 = sbr.rel (0) target = $region13
    $region12: #{tpu_custom_call.1} parent=1 // pred_region
      _
    $region13: #{tpu_custom_call.1} parent=1 // pred_fallthru
      _
    // Predicated region
    $region14: #{tpu_custom_call.1} parent=1 // pred_check
      _
    $region15: #{tpu_custom_call.1} parent=1 // pred_check_branch
      %44 = sbr.rel (0) target = $region17
    $region16: #{tpu_custom_call.1} parent=1 // pred_region
      %46 = vsyncadd [#allocation6], 0
      %s47 = sshll.u32 %s3, 4
      %s48 = int_to_ptr.hbm [resolvable:$true] %s47
      %s49 = sshll.u32 [#allocation7], 4
      %s50 = int_to_ptr.vmem [resolvable:$true] %s49
      %55 = dma.hbm_to_vmem [thread:$0]  %s48, 1024, %s50, [#allocation6], 64, 64, 4
    $region17: #{tpu_custom_call.1} parent=1 // pred_fallthru
      _
    // Predicated region
    $region18: #{tpu_custom_call.1} parent=1 // pred_check
      _
    $region19: #{tpu_custom_call.1} parent=1 // pred_check_branch
      %57 = sbr.rel (0) target = $region21
    $region20: #{tpu_custom_call.1} parent=1 // pred_region
      _
    $region21: #{tpu_custom_call.1} parent=1 // pred_fallthru
      _
    // Predicated region
    $region22: #{tpu_custom_call.1} parent=1 // pred_check
      _
    $region23: #{tpu_custom_call.1} parent=1 // pred_check_branch
      %59 = sbr.rel (0) target = $region25
    $region24: #{tpu_custom_call.1} parent=1 // pred_region
      %61 = vsyncadd [#allocation9], 0
      %s62 = sshll.u32 %s5, 4
      %s63 = int_to_ptr.hbm [resolvable:$true] %s62
      %s64 = sshll.u32 [#allocation8], 4
      %s65 = int_to_ptr.vmem [resolvable:$true] %s64
      %70 = dma.hbm_to_vmem [thread:$0]  %s63, 256, %s65, [#allocation9], 128, 128, 8
    $region25: #{tpu_custom_call.1} parent=1 // pred_fallthru
      _
    // Predicated region
    $region26: #{tpu_custom_call.1} parent=1 // pred_check
      _
    $region27: #{tpu_custom_call.1} parent=1 // pred_check_branch
      %72 = sbr.rel (0) target = $region29
    $region28: #{tpu_custom_call.1} parent=1 // pred_region
      %74 = dma.done [#allocation3], 256
    $region29: #{tpu_custom_call.1} parent=1 // pred_fallthru
      _
    // Predicated region
    $region30: #{tpu_custom_call.1} parent=1 // pred_check
      _
    $region31: #{tpu_custom_call.1} parent=1 // pred_check_branch
      %76 = sbr.rel (0) target = $region33
    $region32: #{tpu_custom_call.1} parent=1 // pred_region
      %78 = dma.done [#allocation6], 1024
    $region33: #{tpu_custom_call.1} parent=1 // pred_fallthru
      _
    // Predicated region
    $region34: #{tpu_custom_call.1} parent=1 // pred_check
      _
    $region35: #{tpu_custom_call.1} parent=1 // pred_check_branch
      %80 = sbr.rel (0) target = $region37
    $region36: #{tpu_custom_call.1} parent=1 // pred_region
      %82 = dma.done [#allocation6], 1024
    $region37: #{tpu_custom_call.1} parent=1 // pred_fallthru
      _
    // Predicated region
    $region38: #{tpu_custom_call.1} parent=1 // pred_check
      _
    $region39: #{tpu_custom_call.1} parent=1 // pred_check_branch
      %84 = sbr.rel (0) target = $region41
    $region40: #{tpu_custom_call.1} parent=1 // pred_region
      %86 = dma.done [#allocation9], 256
    $region41: #{tpu_custom_call.1} parent=1 // pred_fallthru
      _
    %v87 = vld [vmem:[#allocation2] sm:$0xff]
    %v88 = vld [vmem:[#allocation2 + $0x8] sm:$0xff]
    %v89 = vpack.c.bf16 %v88, %v87
    %v90 = vld [vmem:[#allocation5] sm:$0xf]
    %v91 = vld [vmem:[#allocation5 + $0x4] sm:$0xf]
    %v92 = vld [vmem:[#allocation5 + $0x8] sm:$0xf]
    %v93 = vld [vmem:[#allocation5 + $0xc] sm:$0xf]
    %v94 = vld [vmem:[#allocation5 + $0x10] sm:$0xf]
    %v95 = vld [vmem:[#allocation5 + $0x14] sm:$0xf]
    %v96 = vld [vmem:[#allocation5 + $0x18] sm:$0xf]
    %v97 = vld [vmem:[#allocation5 + $0x1c] sm:$0xf]
    %v98 = vld [vmem:[#allocation5 + $0x20] sm:$0xf]
    %v99 = vld [vmem:[#allocation5 + $0x24] sm:$0xf]
    %v100 = vld [vmem:[#allocation5 + $0x28] sm:$0xf]
    %v101 = vld [vmem:[#allocation5 + $0x2c] sm:$0xf]
    %v102 = vld [vmem:[#allocation5 + $0x30] sm:$0xf]
    %v103 = vld [vmem:[#allocation5 + $0x34] sm:$0xf]
    %v104 = vld [vmem:[#allocation5 + $0x38] sm:$0xf]
    %v105 = vld [vmem:[#allocation5 + $0x3c] sm:$0xf]
    %v106 = vld [vmem:[%s2] sm:$0x1]
    %v108 = vperm.slane %v106, 0
    %v126 = vunpack.c.l.b16 %v90
    %v127 = vunpack.c.l.b16 %v91
    %v128 = vunpack.c.l.b16 %v92
    %v129 = vunpack.c.l.b16 %v93
    %v130 = vunpack.c.l.b16 %v94
    %v131 = vunpack.c.l.b16 %v95
    %v132 = vunpack.c.l.b16 %v96
    %v133 = vunpack.c.l.b16 %v97
    %v134 = vunpack.c.l.b16 %v98
    %v135 = vunpack.c.l.b16 %v99
    %v136 = vunpack.c.l.b16 %v100
    %v137 = vunpack.c.l.b16 %v101
    %v138 = vunpack.c.l.b16 %v102
    %v139 = vunpack.c.l.b16 %v103
    %v140 = vunpack.c.l.b16 %v104
    %v141 = vunpack.c.l.b16 %v105
    %v142 = vpack.c.b16 %v127, %v126
    %v143 = vpack.c.b16 %v129, %v128
    %v144 = vpack.c.b16 %v131, %v130
    %v145 = vpack.c.b16 %v133, %v132
    %v146 = vpack.c.b16 %v135, %v134
    %v147 = vpack.c.b16 %v137, %v136
    %v148 = vpack.c.b16 %v139, %v138
    %v149 = vpack.c.b16 %v141, %v140
    %158 = vmatpush.bf16.msra.mxu0 %v149
    %159 = vmatpush.bf16.msra.mxu0 %v148
    %160 = vmatpush.bf16.msra.mxu0 %v147
    %161 = vmatpush.bf16.msra.mxu0 %v146
    %162 = vmatpush.bf16.msra.mxu0 %v145
    %163 = vmatpush.bf16.msra.mxu0 %v144
    %164 = vmatpush.bf16.msra.mxu0 %v143
    %165 = vmatpush.bf16.msra.mxu0 %v142
    %166 = vmatmul.bf16.gmra.mxu0 %v89
    %v167 = vpop.f32.mrf.mxu0
    %v168 = vadd.f32 %v108, %v167
    %v169 = vpop.f32.mrf.mxu0
    %v170 = vadd.f32 %v108, %v169
    %171 = vdwg.mxu0
    %v172 = vmax.f32 %v168, 0.0
    %v173 = vmax.f32 %v170, 0.0
    %v174 = vpack.c.bf16 %v173, %v172
    %v175 = vld [vmem:[#allocation7] sm:$0xf]
    %v176 = vld [vmem:[#allocation7 + $0x4] sm:$0xf]
    %v177 = vld [vmem:[#allocation7 + $0x8] sm:$0xf]
    %v178 = vld [vmem:[#allocation7 + $0xc] sm:$0xf]
    %v179 = vld [vmem:[#allocation7 + $0x10] sm:$0xf]
    %v180 = vld [vmem:[#allocation7 + $0x14] sm:$0xf]
    %v181 = vld [vmem:[#allocation7 + $0x18] sm:$0xf]
    %v182 = vld [vmem:[#allocation7 + $0x1c] sm:$0xf]
    %v183 = vld [vmem:[#allocation7 + $0x20] sm:$0xf]
    %v184 = vld [vmem:[#allocation7 + $0x24] sm:$0xf]
    %v185 = vld [vmem:[#allocation7 + $0x28] sm:$0xf]
    %v186 = vld [vmem:[#allocation7 + $0x2c] sm:$0xf]
    %v187 = vld [vmem:[#allocation7 + $0x30] sm:$0xf]
    %v188 = vld [vmem:[#allocation7 + $0x34] sm:$0xf]
    %v189 = vld [vmem:[#allocation7 + $0x38] sm:$0xf]
    %v190 = vld [vmem:[#allocation7 + $0x3c] sm:$0xf]
    %v191 = vld [vmem:[%s4] sm:$0x1]
    %v193 = vperm.slane %v191, 0
    %v211 = vunpack.c.l.b16 %v175
    %v212 = vunpack.c.l.b16 %v176
    %v213 = vunpack.c.l.b16 %v177
    %v214 = vunpack.c.l.b16 %v178
    %v215 = vunpack.c.l.b16 %v179
    %v216 = vunpack.c.l.b16 %v180
    %v217 = vunpack.c.l.b16 %v181
    %v218 = vunpack.c.l.b16 %v182
    %v219 = vunpack.c.l.b16 %v183
    %v220 = vunpack.c.l.b16 %v184
    %v221 = vunpack.c.l.b16 %v185
    %v222 = vunpack.c.l.b16 %v186
    %v223 = vunpack.c.l.b16 %v187
    %v224 = vunpack.c.l.b16 %v188
    %v225 = vunpack.c.l.b16 %v189
    %v226 = vunpack.c.l.b16 %v190
    %v227 = vpack.c.b16 %v212, %v211
    %v228 = vpack.c.b16 %v214, %v213
    %v229 = vpack.c.b16 %v216, %v215
    %v230 = vpack.c.b16 %v218, %v217
    %v231 = vpack.c.b16 %v220, %v219
    %v232 = vpack.c.b16 %v222, %v221
    %v233 = vpack.c.b16 %v224, %v223
    %v234 = vpack.c.b16 %v226, %v225
    %243 = vmatpush.bf16.msra.mxu0 %v234
    %244 = vmatpush.bf16.msra.mxu0 %v233
    %245 = vmatpush.bf16.msra.mxu0 %v232
    %246 = vmatpush.bf16.msra.mxu0 %v231
    %247 = vmatpush.bf16.msra.mxu0 %v230
    %248 = vmatpush.bf16.msra.mxu0 %v229
    %249 = vmatpush.bf16.msra.mxu0 %v228
    %250 = vmatpush.bf16.msra.mxu0 %v227
    %251 = vmatmul.bf16.gmra.mxu0 %v174
    %v252 = vpop.f32.mrf.mxu0
    %v253 = vadd.f32 %v193, %v252
    %v254 = vpop.f32.mrf.mxu0
    %v255 = vadd.f32 %v193, %v254
    %256 = vdwg.mxu0
    %v257 = vld [vmem:[#allocation8] sm:$0xff]
    %v258 = vld [vmem:[#allocation8 + $0x8] sm:$0xff]
    %v259 = vadd.s32 %v257, 2147483648
    %vm261 = vcmp.ge.s32.totalorder %v259, 3006477107
    %v262 = vadd.s32 %v258, 2147483648
    %vm264 = vcmp.ge.s32.totalorder %v262, 3006477107
    %v265 = vmul.f32 %v253, 1.25
    %v266 = vmul.f32 %v255, 1.25
    %v267 = vsel %vm261, %v265, 0.0
    %v268 = vsel %vm264, %v266, 0.0
    %269 = vst [vmem:[#allocation10] sm:$0xff] %v267
    %270 = vst [vmem:[#allocation10 + $0x8] sm:$0xff] %v268
    // Predicated region
    $region42: #{tpu_custom_call.1} parent=1 // pred_check
      _
    $region43: #{tpu_custom_call.1} parent=1 // pred_check_branch
      %272 = sbr.rel (0) target = $region45
    $region44: #{tpu_custom_call.1} parent=1 // pred_region
      %274 = vsyncadd [#allocation4], 0
      %s275 = sshll.u32 [#allocation10], 4
      %s276 = int_to_ptr.vmem [resolvable:$true] %s275
      %s277 = sshll.u32 %s6, 4
      %s278 = int_to_ptr.hbm [resolvable:$true] %s277
      %283 = dma.vmem_to_hbm [thread:$0]  %s276, 256, %s278, [#allocation4], 128, 128, 8
    $region45: #{tpu_custom_call.1} parent=1 // pred_fallthru
      _
    // Predicated region
    $region46: #{tpu_custom_call.1} parent=1 // pred_check
      _
    $region47: #{tpu_custom_call.1} parent=1 // pred_check_branch
      %285 = sbr.rel (0) target = $region49
    $region48: #{tpu_custom_call.1} parent=1 // pred_region
      %287 = dma.done [#allocation4], 256
    $region49: #{tpu_custom_call.1} parent=1 // pred_fallthru
      _
    %288 = vsyncpa [#allocation3], 1
    %289 = vsyncpa [#allocation6], 1
    %290 = vsyncpa [#allocation9], 1
    %291 = vsyncpa [#allocation4], 1

</llo_original>
